<compile_context>
chip_gen: v7x
topology: tpu7x:2x2x1
jax: 0.10.0
libtpu: 0.0.40
codegen_flags: <defaults>
</compile_context>

<pallas_src>
import jax
import jax.numpy as jnp
from jax import lax
from jax.experimental import pallas as pl
from jax.experimental.pallas import tpu as pltpu


# ----------------------------------------------------------------------------
# Kernel: one grid step = (batch tile i, flow f)
# ----------------------------------------------------------------------------
def _flows_kernel(x_ref, w_ref, b_ref, omm_ref,      # inputs
                  zs_ref, ld_ref,                     # outputs
                  x_carry, ld_acc):                   # VMEM scratch
    f = pl.program_id(1)
    n_flows = pl.num_programs(1)

    # New batch tile: load activation into the carry, zero the log_det acc.
    @pl.when(f == 0)
    def _():
        x_carry[...] = x_ref[...].astype(jnp.float32)
        ld_acc[...] = jnp.zeros_like(ld_acc)

    x = x_carry[...]                                   # [TB, Dp] f32
    dp = x.shape[-1]

    # Single fused (mask-folded) MXU matmul: [TB, Dp] @ [Dp, 2Dp].
    # Operands may be bf16; accumulation is f32.
    w = w_ref[0]                                       # [Dp, 2Dp]
    st = jnp.dot(x.astype(w.dtype), w,
                 preferred_element_type=jnp.float32)
    st = st + b_ref[0]                                 # f32 bias add

    omm = omm_ref[0]                                   # [1, Dp] == (1 - mask), f32
    s = jnp.tanh(st[:, :dp]) * omm                     # EUP tanh, f32
    t = st[:, dp:] * omm
    y = x * jnp.exp(s) + t                             # masked affine coupling, f32

    x_carry[...] = y                                   # carry to next flow (VMEM only)
    zs_ref[0] = y.astype(zs_ref.dtype)                 # lane-dense [TB, Dp] store

    # log|det J| contribution, accumulated lane-dense (batch in lanes) via a
    # skinny f32 dot on the (otherwise idle) MXU: ones[1,Dp] . s[TB,Dp]^T.
    ones_row = jnp.ones((1, dp), jnp.float32)
    ld_acc[...] += lax.dot_general(ones_row, s, (((1,), (1,)), ((), ())),
                                   preferred_element_type=jnp.float32)

    @pl.when(f == n_flows - 1)
    def _():
        ld_ref[...] = ld_acc[...].reshape(ld_ref.shape)   # one write per batch tile


# ----------------------------------------------------------------------------
# Parameter fusing / padding (done once, outside the kernel)
# ----------------------------------------------------------------------------
def _round_up(x, m):
    return ((x + m - 1) // m) * m


def make_flow_params(raw_params, matmul_dtype=jnp.bfloat16, lane=128):
    """Fuse + stack per-flow RealNVP parameters.

    raw_params: list of (w_s [D,D], b_s [1,D], w_t [D,D], b_t [1,D], mask [D]).
    Folds the coupling mask into the weight rows ((x*m) @ W == x @ (m[:,None]*W)),
    concatenates the scale/translate nets into one wide weight, zero-pads the
    feature dim to a multiple of 128 (lane-full vregs, whole MXU tiles) and
    stacks over flows for the fused kernel.
    """
    D = raw_params[0][0].shape[0]
    Dp = _round_up(D, lane)
    ws, bs, omms = [], [], []
    for (w_s, b_s, w_t, b_t, mask) in raw_params:
        mask = jnp.asarray(mask, jnp.float32).reshape(-1)              # [D]
        w = jnp.concatenate([w_s, w_t], axis=1).astype(jnp.float32)    # [D, 2D]
        w = w * mask[:, None]                                          # fold mask
        b = jnp.concatenate([b_s.reshape(1, -1), b_t.reshape(1, -1)],
                            axis=1).astype(jnp.float32)                # [1, 2D]
        omm = (1.0 - mask).reshape(1, -1)                              # [1, D]

        w_p = jnp.zeros((Dp, 2 * Dp), jnp.float32)
        w_p = w_p.at[:D, :D].set(w[:, :D]).at[:D, Dp:Dp + D].set(w[:, D:])
        b_p = jnp.zeros((1, 2 * Dp), jnp.float32)
        b_p = b_p.at[:, :D].set(b[:, :D]).at[:, Dp:Dp + D].set(b[:, D:])
        omm_p = jnp.zeros((1, Dp), jnp.float32).at[:, :D].set(omm)
        ws.append(w_p); bs.append(b_p); omms.append(omm_p)

    W = jnp.stack(ws).astype(matmul_dtype)     # [F, Dp, 2Dp]  (MXU operand dtype)
    Bv = jnp.stack(bs)                         # [F, 1, 2Dp]   f32 (elementwise)
    OMM = jnp.stack(omms)                      # [F, 1, Dp]    f32 (elementwise)
    return W, Bv, OMM, D


# ----------------------------------------------------------------------------
# Tile selection / VMEM budgeting
# ----------------------------------------------------------------------------
def _vmem_bytes_estimate(tb, dp, w_itemsize):
    x_blk = 2 * tb * dp * 4                       # x, double-buffered
    w_blk = 2 * dp * (2 * dp) * w_itemsize        # fused W block
    b_blk = 2 * 8 * (2 * dp) * 4                  # bias (sublane-padded)
    omm_blk = 2 * 8 * dp * 4
    zs_blk = 2 * tb * dp * 4                      # zs output block
    ld_blk = 2 * 8 * max(tb, 128) * 4             # log_det output block
    scratch = tb * dp * 4 + 8 * max(tb, 128) * 4  # carry + log_det acc
    return x_blk + w_blk + b_blk + omm_blk + zs_blk + ld_blk + scratch


def _pick_batch_tile(b8, dp, w_itemsize):
    budget = 40 * 1024 * 1024                     # comfortably < 64 MiB (v7x)
    for tb in (512, 256, 128, 64, 32, 16, 8):
        if tb > b8:
            continue
        if b8 >= 16 and (b8 + tb - 1) // tb < 2:
            continue                              # keep >=2 batch steps (megacore)
        if _vmem_bytes_estimate(tb, dp, w_itemsize) <= budget:
            return tb
    return 8


# ----------------------------------------------------------------------------
# NormalizingFlows.forward
# ----------------------------------------------------------------------------
def normalizing_flows_forward(x, params):
    """x: [B, D] -> (zs list of n_flows+1 arrays [B, D], log_det [B])."""
    W, Bv, OMM, D = params
    n_flows, Dp, _ = W.shape
    B = x.shape[0]

    w_itemsize = jnp.dtype(W.dtype).itemsize
    B8 = _round_up(max(B, 8), 8)
    TB = _pick_batch_tile(B8, Dp, w_itemsize)
    Bp = _round_up(B8, TB)
    nbt = Bp // TB

    # pad batch + feature dims (padded lanes are inert: mask-folded W rows and
    # (1-m) are zero there, so padded activations stay exactly zero)
    xp = jnp.zeros((Bp, Dp), jnp.float32).at[:B, :D].set(x.astype(jnp.float32))

    est = _vmem_bytes_estimate(TB, Dp, w_itemsize)
    vmem_limit = int(min(64 * 1024 * 1024, max(32 * 1024 * 1024, 2 * est)))

    zs_stacked, ld_tiles = pl.pallas_call(
        _flows_kernel,
        out_shape=(
            jax.ShapeDtypeStruct((n_flows, Bp, Dp), x.dtype),     # zs
            jax.ShapeDtypeStruct((nbt, 1, TB), jnp.float32),      # log_det (lane-dense)
        ),
        grid=(nbt, n_flows),
        in_specs=[
            pl.BlockSpec((TB, Dp), lambda i, f: (i, 0)),          # x: per batch tile
            pl.BlockSpec((1, Dp, 2 * Dp), lambda i, f: (f, 0, 0)),  # W: per flow
            pl.BlockSpec((1, 1, 2 * Dp), lambda i, f: (f, 0, 0)),   # b: per flow
            pl.BlockSpec((1, 1, Dp), lambda i, f: (f, 0, 0)),       # (1-mask): per flow
        ],
        out_specs=(
            pl.BlockSpec((1, TB, Dp), lambda i, f: (f, i, 0)),    # zs
            pl.BlockSpec((1, 1, TB), lambda i, f: (i, 0, 0)),     # log_det
        ),
        scratch_shapes=[
            pltpu.VMEM((TB, Dp), jnp.float32),                    # activation carry
            pltpu.VMEM((1, TB), jnp.float32),                     # log_det accumulator
        ],
        compiler_params=pltpu.CompilerParams(
            dimension_semantics=("parallel", "arbitrary"),
            vmem_limit_bytes=vmem_limit),
    )(xp, W, Bv, OMM)

    log_det = ld_tiles.reshape(Bp)[:B]
    zs = [x] + [zs_stacked[f, :B, :D] for f in range(n_flows)]
    return zs, log_det


# ----------------------------------------------------------------------------
# Pure-JAX reference (matches the RealNVP coupling interpretation)
# ----------------------------------------------------------------------------
def _reference_forward(x, raw_params):
    B = x.shape[0]
    log_det = jnp.zeros((B,), jnp.float32)
    zs = [x]
    for (w_s, b_s, w_t, b_t, mask) in raw_params:
        xm = x * mask
        s = jnp.tanh(xm @ w_s + b_s) * (1.0 - mask)
        t = (xm @ w_t + b_t) * (1.0 - mask)
        x = x * jnp.exp(s) + t
        log_det = log_det + jnp.sum(s, axis=-1)
        zs.append(x)
    return zs, log_det


if __name__ == "__main__":
    key = jax.random.PRNGKey(0)
    B, D, n_flows = 8, 32, 3

    kx, kp = jax.random.split(key)
    x = jax.random.normal(kx, (B, D), dtype=jnp.float32)

    # deterministic synthetic parameters; masks alternate per flow (RealNVP)
    half = jnp.concatenate(
        [jnp.ones((D // 2,), jnp.float32), jnp.zeros((D // 2,), jnp.float32)])
    raw_params = []
    for i in range(n_flows):
        kp, k1, k2, k3, k4 = jax.random.split(kp, 5)
        w_s = jax.random.normal(k1, (D, D), dtype=jnp.float32) * 0.1
        w_t = jax.random.normal(k2, (D, D), dtype=jnp.float32) * 0.1
        b_s = jax.random.normal(k3, (1, D), dtype=jnp.float32) * 0.01
        b_t = jax.random.normal(k4, (1, D), dtype=jnp.float32) * 0.01
        mask = half if (i % 2 == 0) else (1.0 - half)
        raw_params.append((w_s, b_s, w_t, b_t, mask))

    zs_ref, ld_ref = _reference_forward(x, raw_params)

    # 1) f32 MXU path: bit-tight check of the fused-kernel structure.
    params_f32 = make_flow_params(raw_params, matmul_dtype=jnp.float32)
    zs, log_det = normalizing_flows_forward(x, params_f32)
    jax.block_until_ready((zs, log_det))
    for z, zr in zip(zs, zs_ref):
        assert jnp.allclose(z, zr, atol=1e-5, rtol=1e-5)
    assert jnp.allclose(log_det, ld_ref, atol=1e-5, rtol=1e-5)

    # 2) bf16 MXU path (production default: halves weight streaming, 2x MXU
    #    rate); elementwise math stays f32, tolerance loosened accordingly.
    params_bf16 = make_flow_params(raw_params, matmul_dtype=jnp.bfloat16)
    zs_b, log_det_b = normalizing_flows_forward(x, params_bf16)
    jax.block_until_ready((zs_b, log_det_b))
    for z, zr in zip(zs_b, zs_ref):
        assert jnp.allclose(z, zr, atol=5e-2, rtol=5e-2)
    assert jnp.allclose(log_det_b, ld_ref, atol=5e-2, rtol=5e-2)

    print("KERNEL_OK")
</pallas_src>

<mosaic_0001>
module attributes {stable_mosaic.version = 11 : i64} {
  func.func @_flows_kernel(%arg0: i32, %arg1: i32, %arg2: memref<8x128xf32, #tpu.memory_space<vmem>>, %arg3: memref<1x128x256xf32, #tpu.memory_space<vmem>>, %arg4: memref<1x1x256xf32, #tpu.memory_space<vmem>>, %arg5: memref<1x1x128xf32, #tpu.memory_space<vmem>>, %arg6: memref<1x8x128xf32, #tpu.memory_space<vmem>>, %arg7: memref<1x1x8xf32, #tpu.memory_space<vmem>>, %arg8: memref<8x128xf32, #tpu.memory_space<vmem>>, %arg9: memref<1x8xf32, #tpu.memory_space<vmem>>) attributes {dimension_semantics = [#tpu.dimension_semantics<parallel>, #tpu.dimension_semantics<arbitrary>], iteration_bounds = array<i64: 1, 3>, scalar_prefetch = 0 : i64, scratch_operands = 2 : i64, tpu.core_type = #tpu.core_type<tc>, window_params = [{transform_indices = @transform_0, window_bounds = array<i64: 8, 128>}, {transform_indices = @transform_1, window_bounds = array<i64: 1, 128, 256>}, {transform_indices = @transform_2, window_bounds = array<i64: 1, 1, 256>}, {transform_indices = @transform_3, window_bounds = array<i64: 1, 1, 128>}, {transform_indices = @transform_4, window_bounds = array<i64: 1, 8, 128>}, {transform_indices = @transform_5, window_bounds = array<i64: 1, 1, 8>}]} {
    %c0_i32 = arith.constant 0 : i32
    %0 = arith.cmpi eq, %arg1, %c0_i32 : i32
    %1 = arith.extui %0 : i1 to i32
    %c0_i32_0 = arith.constant 0 : i32
    %2 = arith.cmpi ne, %1, %c0_i32_0 : i32
    scf.if %2 {
      %c0_23 = arith.constant 0 : index
      %c0_24 = arith.constant 0 : index
      %35 = vector.load %arg2[%c0_23, %c0_24] : memref<8x128xf32, #tpu.memory_space<vmem>>, vector<8x128xf32>
      %c0_25 = arith.constant 0 : index
      %c0_26 = arith.constant 0 : index
      %36 = vector.load %arg8[%c0_25, %c0_26] : memref<8x128xf32, #tpu.memory_space<vmem>>, vector<8x128xf32>
      tpu.vector_store %arg8[%c0_25, %c0_26], %35 {strides = array<i32>} : memref<8x128xf32, #tpu.memory_space<vmem>>, vector<8x128xf32>,
      %cst_27 = arith.constant 0.000000e+00 : f32
      %37 = vector.broadcast %cst_27 : f32 to vector<1x8xf32>
      %c0_28 = arith.constant 0 : index
      %c0_29 = arith.constant 0 : index
      %38 = vector.load %arg9[%c0_28, %c0_29] : memref<1x8xf32, #tpu.memory_space<vmem>>, vector<1x8xf32>
      tpu.vector_store %arg9[%c0_28, %c0_29], %37 {strides = array<i32>} : memref<1x8xf32, #tpu.memory_space<vmem>>, vector<1x8xf32>,
    } else {
    }
    %c0 = arith.constant 0 : index
    %c0_1 = arith.constant 0 : index
    %3 = vector.load %arg8[%c0, %c0_1] : memref<8x128xf32, #tpu.memory_space<vmem>>, vector<8x128xf32>
    %c0_2 = arith.constant 0 : index
    %c0_3 = arith.constant 0 : index
    %c0_4 = arith.constant 0 : index
    %4 = vector.load %arg3[%c0_2, %c0_3, %c0_4] : memref<1x128x256xf32, #tpu.memory_space<vmem>>, vector<1x128x256xf32>
    %5 = vector.shape_cast %4 : vector<1x128x256xf32> to vector<128x256xf32>
    %cst = arith.constant dense<0.000000e+00> : vector<8x256xf32>
    %6 = tpu.matmul %3, %5, %cst {dimension_numbers = #tpu.dot_dimension_numbers<[1], [0], [0], [1], [0, 0, 1, 1], [], []>} : vector<8x128xf32>, vector<128x256xf32>, vector<8x256xf32> -> vector<8x256xf32>
    %c0_5 = arith.constant 0 : index
    %c0_6 = arith.constant 0 : index
    %c0_7 = arith.constant 0 : index
    %7 = vector.load %arg4[%c0_5, %c0_6, %c0_7] : memref<1x1x256xf32, #tpu.memory_space<vmem>>, vector<1x1x256xf32>
    %8 = vector.shape_cast %7 : vector<1x1x256xf32> to vector<1x256xf32>
    %9 = vector.broadcast %8 : vector<1x256xf32> to vector<8x256xf32>
    %10 = arith.addf %6, %9 : vector<8x256xf32>
    %c0_8 = arith.constant 0 : index
    %c0_9 = arith.constant 0 : index
    %c0_10 = arith.constant 0 : index
    %11 = vector.load %arg5[%c0_8, %c0_9, %c0_10] : memref<1x1x128xf32, #tpu.memory_space<vmem>>, vector<1x1x128xf32>
    %12 = vector.shape_cast %11 : vector<1x1x128xf32> to vector<1x128xf32>
    %13 = vector.extract_strided_slice %10 {offsets = [0, 0], sizes = [8, 128], strides = [1, 1]} : vector<8x256xf32> to vector<8x128xf32>
    %14 = math.tanh %13 : vector<8x128xf32>
    %15 = vector.broadcast %12 : vector<1x128xf32> to vector<8x128xf32>
    %16 = arith.mulf %14, %15 : vector<8x128xf32>
    %17 = vector.extract_strided_slice %10 {offsets = [0, 128], sizes = [8, 128], strides = [1, 1]} : vector<8x256xf32> to vector<8x128xf32>
    %18 = vector.broadcast %12 : vector<1x128xf32> to vector<8x128xf32>
    %19 = arith.mulf %17, %18 : vector<8x128xf32>
    %20 = math.exp %16 : vector<8x128xf32>
    %21 = arith.mulf %3, %20 : vector<8x128xf32>
    %22 = arith.addf %21, %19 : vector<8x128xf32>
    %c0_11 = arith.constant 0 : index
    %c0_12 = arith.constant 0 : index
    %23 = vector.load %arg8[%c0_11, %c0_12] : memref<8x128xf32, #tpu.memory_space<vmem>>, vector<8x128xf32>
    tpu.vector_store %arg8[%c0_11, %c0_12], %22 {strides = array<i32>} : memref<8x128xf32, #tpu.memory_space<vmem>>, vector<8x128xf32>,
    %c0_13 = arith.constant 0 : index
    %c0_14 = arith.constant 0 : index
    %c0_15 = arith.constant 0 : index
    %24 = vector.load %arg6[%c0_13, %c0_14, %c0_15] : memref<1x8x128xf32, #tpu.memory_space<vmem>>, vector<1x8x128xf32>
    %25 = vector.shape_cast %24 : vector<1x8x128xf32> to vector<8x128xf32>
    %26 = vector.shape_cast %22 : vector<8x128xf32> to vector<1x8x128xf32>
    tpu.vector_store %arg6[%c0_13, %c0_14, %c0_15], %26 {strides = array<i32>} : memref<1x8x128xf32, #tpu.memory_space<vmem>>, vector<1x8x128xf32>,
    %cst_16 = arith.constant 1.000000e+00 : f32
    %27 = vector.broadcast %cst_16 : f32 to vector<1x128xf32>
    %c0_17 = arith.constant 0 : index
    %c0_18 = arith.constant 0 : index
    %28 = vector.load %arg9[%c0_17, %c0_18] : memref<1x8xf32, #tpu.memory_space<vmem>>, vector<1x8xf32>
    %cst_19 = arith.constant dense<0.000000e+00> : vector<1x8xf32>
    %29 = tpu.matmul %27, %16, %cst_19 {dimension_numbers = #tpu.dot_dimension_numbers<[1], [1], [0], [0], [0, 0, 1, 0], [], []>} : vector<1x128xf32>, vector<8x128xf32>, vector<1x8xf32> -> vector<1x8xf32>
    %30 = arith.addf %28, %29 : vector<1x8xf32>
    %c0_20 = arith.constant 0 : index
    %c0_21 = arith.constant 0 : index
    %31 = vector.load %arg9[%c0_20, %c0_21] : memref<1x8xf32, #tpu.memory_space<vmem>>, vector<1x8xf32>
    tpu.vector_store %arg9[%c0_20, %c0_21], %30 {strides = array<i32>} : memref<1x8xf32, #tpu.memory_space<vmem>>, vector<1x8xf32>,
    %c2_i32 = arith.constant 2 : i32
    %32 = arith.cmpi eq, %arg1, %c2_i32 : i32
    %33 = arith.extui %32 : i1 to i32
    %c0_i32_22 = arith.constant 0 : i32
    %34 = arith.cmpi ne, %33, %c0_i32_22 : i32
    scf.if %34 {
      %c0_23 = arith.constant 0 : index
      %c0_24 = arith.constant 0 : index
      %35 = vector.load %arg9[%c0_23, %c0_24] : memref<1x8xf32, #tpu.memory_space<vmem>>, vector<1x8xf32>
      %36 = vector.shape_cast %35 : vector<1x8xf32> to vector<1x1x8xf32>
      %c0_25 = arith.constant 0 : index
      %c0_26 = arith.constant 0 : index
      %c0_27 = arith.constant 0 : index
      %37 = vector.load %arg7[%c0_25, %c0_26, %c0_27] : memref<1x1x8xf32, #tpu.memory_space<vmem>>, vector<1x1x8xf32>
      tpu.vector_store %arg7[%c0_25, %c0_26, %c0_27], %36 {strides = array<i32>} : memref<1x1x8xf32, #tpu.memory_space<vmem>>, vector<1x1x8xf32>,
    } else {
    }
    return
  }
  func.func @transform_0(%arg0: i32, %arg1: i32) -> (i32, i32) {
    %c0_i32 = arith.constant 0 : i32
    %c0_i32_0 = arith.constant 0 : i32
    return %arg0, %c0_i32 : i32, i32
  }
  func.func @transform_1(%arg0: i32, %arg1: i32) -> (i32, i32, i32) {
    %c0_i32 = arith.constant 0 : i32
    %c0_i32_0 = arith.constant 0 : i32
    %c0_i32_1 = arith.constant 0 : i32
    return %arg1, %c0_i32, %c0_i32_0 : i32, i32, i32
  }
  func.func @transform_2(%arg0: i32, %arg1: i32) -> (i32, i32, i32) {
    %c0_i32 = arith.constant 0 : i32
    %c0_i32_0 = arith.constant 0 : i32
    %c0_i32_1 = arith.constant 0 : i32
    return %arg1, %c0_i32, %c0_i32_0 : i32, i32, i32
  }
  func.func @transform_3(%arg0: i32, %arg1: i32) -> (i32, i32, i32) {
    %c0_i32 = arith.constant 0 : i32
    %c0_i32_0 = arith.constant 0 : i32
    %c0_i32_1 = arith.constant 0 : i32
    return %arg1, %c0_i32, %c0_i32_0 : i32, i32, i32
  }
  func.func @transform_4(%arg0: i32, %arg1: i32) -> (i32, i32, i32) {
    %c0_i32 = arith.constant 0 : i32
    %c0_i32_0 = arith.constant 0 : i32
    return %arg1, %arg0, %c0_i32 : i32, i32, i32
  }
  func.func @transform_5(%arg0: i32, %arg1: i32) -> (i32, i32, i32) {
    %c0_i32 = arith.constant 0 : i32
    %c0_i32_0 = arith.constant 0 : i32
    %c0_i32_1 = arith.constant 0 : i32
    return %arg0, %c0_i32, %c0_i32_0 : i32, i32, i32
  }
}

</mosaic_0001>

<llo_original>
// kernel: tpu_custom_call.1
$region0: #{tpu_custom_call.1}
  #allocation0 [shape = 'u32[]', space=smem, size = 0x4, offset = 0x4, fixed_abs, tag = 'smem constant byte address 0x4 - core index']
  #allocation1 [shape = 'u32[144,128]{1,0:T(1,128)}', space=vmem, size = 0x12000, scoped, tag = 'internal scratch']
  #allocation2 [shape = 'f32[8,128]{1,0:T(8,128)}', space=vmem, size = 0x1000, scoped, tag = 'scratch operand']
  #allocation3 [shape = 'f32[1,8]{1,0:T(1,128)}', space=vmem, size = 0x200, scoped, tag = 'scratch operand']
  %s0 = inlined_call_operand.hbm [shape: f32[8,128], index: 0, kind: input, shape index: {}]
  %s1 = inlined_call_operand.hbm [shape: f32[3,128,256], index: 1, kind: input, shape index: {}]
  %s2 = inlined_call_operand.vmem [shape: f32[3,1,256], index: 2, kind: input, shape index: {}]
  %s3 = inlined_call_operand.vmem [shape: f32[3,1,128], index: 3, kind: input, shape index: {}]
  %s4 = inlined_call_operand.hbm [shape: f32[3,8,128], index: 4, kind: output, shape index: {0}]
  %s5 = inlined_call_operand.hbm [shape: f32[1,1,8], index: 5, kind: output, shape index: {1}]
  %6 = xla_tuple %s4, %s5
  %s7 = sld [smem:[#allocation0]]
  $region73: #{tpu_custom_call.1} parent=0
    _
  %s9 = ssub.s32 1, %s7
  %s10 = scalar_select 0, %s9, %s7
  $region1: #{tpu_custom_call.1} parent=0
    #allocation4 [shape = 'u8[4096]{0}', space=vmem, size = 0x1000, scoped, tag = 'input window, operand 0, single buffered']
    #allocation5 [shape = 's32[2]{0}', space=sflag, size = 0x8, scoped, tag = 'scoped memory for tpu_custom_call.1']
    #allocation6 [shape = 's32[2]{0}', space=sflag, size = 0x8, scoped, tag = 'scoped memory for tpu_custom_call.1']
    #allocation7 [shape = 'u8[262144]{0}', space=vmem, size = 0x40000, scoped, tag = 'input window, operand 1']
    #allocation8 [shape = 's32[2]{0}', space=sflag, size = 0x8, scoped, tag = 'scoped memory for tpu_custom_call.1']
    #allocation9 [shape = 'u8[8192]{0}', space=vmem, size = 0x2000, scoped, tag = 'output window, operand 0']
    #allocation10 [shape = 'u8[512]{0}', space=vmem, size = 0x400, scoped, tag = 'output window, operand 1, single buffered']
    #allocation11 [shape = 's32[1]{0}', space=sflag, size = 0x4, scoped, tag = 'scoped memory for tpu_custom_call.1']
    %11 = vsyncpa [#allocation5], 0
    %12 = vsyncpa [#allocation8], 0
    %s13 = scalar_lea.sflag [#allocation8], 1
    %14 = vsyncpa %s13, 0
    %15 = vsyncpa [#allocation6], 0
    %s16 = scalar_lea.sflag [#allocation6], 1
    %17 = vsyncpa %s16, 0
    %18 = vsyncpa [#allocation11], 0
    loop: start=0, step=1, limit=5
    $region2: #{tpu_custom_call.1} parent=1 // loop_pre_header
      _
    $region3: #{tpu_custom_call.1} parent=1 // loop_header
      %s20 = sphi 0, %s24
      %p21 = scmp.ge.s32.totalorder %s20, 5
      %s27 = sphi 0, %s39
      %s28 = sphi 0, %s35
      %s29 = sphi 0, %s27
      %s30 = sphi 0, %s28
      %s31 = sphi 0, %s29
      %s32 = sphi 0, %s30
      %s42 = sphi 0, %s44
      %s45 = sphi 0, %s42
      %s46 = sphi 0, %s45
      %s62 = sphi 0, %s46
      %s68 = sphi 0, %s70
      %s71 = sphi 0, %s68
      %s72 = sphi 0, %s71
      %s88 = sphi 0, %s72
      %s94 = sphi 0, %s96
      %s97 = sphi 0, %s94
      %s98 = sphi 0, %s97
      %s114 = sphi 0, %s98
      %s120 = sphi 0, %s122
      %s123 = sphi 0, %s120
      %s124 = sphi 0, %s123
      %s140 = sphi 0, %s124
      %s148 = sphi 0, %s150
      %s151 = sphi 0, %s148
      %s152 = sphi 0, %s151
      %s168 = sphi 0, %s152
      %s174 = sphi 0, %s176
      %s177 = sphi 0, %s174
      %s178 = sphi 0, %s177
      %s194 = sphi 0, %s178
    $region4: #{tpu_custom_call.1} parent=1 // loop_header_branch
      %23 = sbr.rel (%p21) target = $region8
    $region5: #{tpu_custom_call.1} parent=1 // loop_body
      %s25 = ssub.s32 %s20, 1
      %s26 = ssub.s32 %s20, 2
      %s33 = sadd.s32 1, %s28
      %p34 = scmp.ge.s32.totalorder %s33, 3
      %s35 = scalar_select %p34, 0, %s33
      %s36 = sadd.s32 1, %s27
      %s37 = scalar_select %p34, %s36, %s27
      %p38 = scmp.ge.s32.totalorder %s37, 1
      %s39 = scalar_select %p38, 0, %s37
      %s40 = ssub.s32 %s27, %s39
      %p41 = scmp.eq.s32.totalorder %s40, 0
      %s43 = sadd.s32 %s42, 1
      %s44 = scalar_select %p41, %s42, %s43
      %p47 = pneg %p41
      %p48 = scmp.eq.s32.totalorder %s20, 2
      %p49 = por %p47, %p48
      %p50 = scmp.ne.s32.totalorder %s42, %s45
      %p51 = scmp.eq.s32.totalorder %s20, 0
      %p52 = por %p50, %p51
      %p53 = scmp.ne.s32.totalorder %s42, %s45
      %p54 = scmp.eq.s32.totalorder %s25, 2
      %p55 = por %p53, %p54
      %p56 = scmp.ne.s32.totalorder %s45, %s46
      %p57 = scmp.eq.s32.totalorder %s25, 0
      %p58 = por %p56, %p57
      %p59 = scmp.ne.s32.totalorder %s45, %s46
      %p60 = scmp.eq.s32.totalorder %s26, 2
      %p61 = por %p59, %p60
      %p63 = scmp.ne.s32.totalorder %s46, %s62
      %p64 = scmp.eq.s32.totalorder %s26, 0
      %p65 = por %p63, %p64
      %s66 = ssub.s32 %s28, %s35
      %p67 = scmp.eq.s32.totalorder %s66, 0
      %s69 = sadd.s32 %s68, 1
      %s70 = scalar_select %p67, %s68, %s69
      %p73 = pneg %p67
      %p74 = scmp.eq.s32.totalorder %s20, 2
      %p75 = por %p73, %p74
      %p76 = scmp.ne.s32.totalorder %s68, %s71
      %p77 = scmp.eq.s32.totalorder %s20, 0
      %p78 = por %p76, %p77
      %p79 = scmp.ne.s32.totalorder %s68, %s71
      %p80 = scmp.eq.s32.totalorder %s25, 2
      %p81 = por %p79, %p80
      %p82 = scmp.ne.s32.totalorder %s71, %s72
      %p83 = scmp.eq.s32.totalorder %s25, 0
      %p84 = por %p82, %p83
      %p85 = scmp.ne.s32.totalorder %s71, %s72
      %p86 = scmp.eq.s32.totalorder %s26, 2
      %p87 = por %p85, %p86
      %p89 = scmp.ne.s32.totalorder %s72, %s88
      %p90 = scmp.eq.s32.totalorder %s26, 0
      %p91 = por %p89, %p90
      %s92 = ssub.s32 %s28, %s35
      %p93 = scmp.eq.s32.totalorder %s92, 0
      %s95 = sadd.s32 %s94, 1
      %s96 = scalar_select %p93, %s94, %s95
      %p99 = pneg %p93
      %p100 = scmp.eq.s32.totalorder %s20, 2
      %p101 = por %p99, %p100
      %p102 = scmp.ne.s32.totalorder %s94, %s97
      %p103 = scmp.eq.s32.totalorder %s20, 0
      %p104 = por %p102, %p103
      %p105 = scmp.ne.s32.totalorder %s94, %s97
      %p106 = scmp.eq.s32.totalorder %s25, 2
      %p107 = por %p105, %p106
      %p108 = scmp.ne.s32.totalorder %s97, %s98
      %p109 = scmp.eq.s32.totalorder %s25, 0
      %p110 = por %p108, %p109
      %p111 = scmp.ne.s32.totalorder %s97, %s98
      %p112 = scmp.eq.s32.totalorder %s26, 2
      %p113 = por %p111, %p112
      %p115 = scmp.ne.s32.totalorder %s98, %s114
      %p116 = scmp.eq.s32.totalorder %s26, 0
      %p117 = por %p115, %p116
      %s118 = ssub.s32 %s28, %s35
      %p119 = scmp.eq.s32.totalorder %s118, 0
      %s121 = sadd.s32 %s120, 1
      %s122 = scalar_select %p119, %s120, %s121
      %p125 = pneg %p119
      %p126 = scmp.eq.s32.totalorder %s20, 2
      %p127 = por %p125, %p126
      %p128 = scmp.ne.s32.totalorder %s120, %s123
      %p129 = scmp.eq.s32.totalorder %s20, 0
      %p130 = por %p128, %p129
      %p131 = scmp.ne.s32.totalorder %s120, %s123
      %p132 = scmp.eq.s32.totalorder %s25, 2
      %p133 = por %p131, %p132
      %p134 = scmp.ne.s32.totalorder %s123, %s124
      %p135 = scmp.eq.s32.totalorder %s25, 0
      %p136 = por %p134, %p135
      %p137 = scmp.ne.s32.totalorder %s123, %s124
      %p138 = scmp.eq.s32.totalorder %s26, 2
      %p139 = por %p137, %p138
      %p141 = scmp.ne.s32.totalorder %s124, %s140
      %p142 = scmp.eq.s32.totalorder %s26, 0
      %p143 = por %p141, %p142
      %s144 = ssub.s32 %s28, %s35
      %s145 = ssub.s32 %s27, %s39
      %s146 = sor.u32 %s144, %s145
      %p147 = scmp.eq.s32.totalorder %s146, 0
      %s149 = sadd.s32 %s148, 1
      %s150 = scalar_select %p147, %s148, %s149
      %p153 = pneg %p147
      %p154 = scmp.eq.s32.totalorder %s20, 2
      %p155 = por %p153, %p154
      %p156 = scmp.ne.s32.totalorder %s148, %s151
      %p157 = scmp.eq.s32.totalorder %s20, 0
      %p158 = por %p156, %p157
      %p159 = scmp.ne.s32.totalorder %s148, %s151
      %p160 = scmp.eq.s32.totalorder %s25, 2
      %p161 = por %p159, %p160
      %p162 = scmp.ne.s32.totalorder %s151, %s152
      %p163 = scmp.eq.s32.totalorder %s25, 0
      %p164 = por %p162, %p163
      %p165 = scmp.ne.s32.totalorder %s151, %s152
      %p166 = scmp.eq.s32.totalorder %s26, 2
      %p167 = por %p165, %p166
      %p169 = scmp.ne.s32.totalorder %s152, %s168
      %p170 = scmp.eq.s32.totalorder %s26, 0
      %p171 = por %p169, %p170
      %s172 = ssub.s32 %s27, %s39
      %p173 = scmp.eq.s32.totalorder %s172, 0
      %s175 = sadd.s32 %s174, 1
      %s176 = scalar_select %p173, %s174, %s175
      %p179 = pneg %p173
      %p180 = scmp.eq.s32.totalorder %s20, 2
      %p181 = por %p179, %p180
      %p182 = scmp.ne.s32.totalorder %s174, %s177
      %p183 = scmp.eq.s32.totalorder %s20, 0
      %p184 = por %p182, %p183
      %p185 = scmp.ne.s32.totalorder %s174, %s177
      %p186 = scmp.eq.s32.totalorder %s25, 2
      %p187 = por %p185, %p186
      %p188 = scmp.ne.s32.totalorder %s177, %s178
      %p189 = scmp.eq.s32.totalorder %s25, 0
      %p190 = por %p188, %p189
      %p191 = scmp.ne.s32.totalorder %s177, %s178
      %p192 = scmp.eq.s32.totalorder %s26, 2
      %p193 = por %p191, %p192
      %p195 = scmp.ne.s32.totalorder %s178, %s194
      %p196 = scmp.eq.s32.totalorder %s26, 0
      %p197 = por %p195, %p196
      %p198 = scmp.le.s32.totalorder 1, %s20
      %p199 = scmp.lt.s32.totalorder %s20, 4
      %p200 = pnand %p198, %p199
      %p201 = pneg %p200
      // Predicated region
      $region9: #{tpu_custom_call.1} parent=5 // pred_check
        _
      $region10: #{tpu_custom_call.1} parent=5 // pred_check_branch
        %203 = sbr.rel (%p200) target = $region12
      $region11: #{tpu_custom_call.1} parent=5 // pred_region
        %s204 = ssub.s32 %s20, 1
        // Predicated region
        $region13: #{tpu_custom_call.1} parent=11 // pred_check
          %p205 = pneg %p58
        $region14: #{tpu_custom_call.1} parent=11 // pred_check_branch
          %207 = sbr.rel (%p205) target = $region16
        $region15: #{tpu_custom_call.1} parent=11 // pred_region
          %s209 = ssub.s32 128, 128
          %210 = vsyncadd [#allocation5], %s209
          %s211 = smul.addr %s29, 128
          %s212 = scalar_lea.hbm %s0, %s211
          %s214 = sshll.u32 [#allocation4], 4
          %s215 = int_to_ptr.vmem [resolvable:$true] %s214
          %217 = dma.hbm_to_vmem [thread:$0]  %s212, 128, %s215, [#allocation5]
        $region16: #{tpu_custom_call.1} parent=11 // pred_fallthru
          _
      $region12: #{tpu_custom_call.1} parent=5 // pred_fallthru
        _
      %p218 = scmp.lt.s32.totalorder %s20, 3
      // Predicated region
      $region17: #{tpu_custom_call.1} parent=5 // pred_check
        %p219 = pneg %p218
      $region18: #{tpu_custom_call.1} parent=5 // pred_check_branch
        %221 = sbr.rel (%p219) target = $region20
      $region19: #{tpu_custom_call.1} parent=5 // pred_region
        // Predicated region
        $region21: #{tpu_custom_call.1} parent=19 // pred_check
          %p222 = pneg %p78
        $region22: #{tpu_custom_call.1} parent=19 // pred_check_branch
          %224 = sbr.rel (%p222) target = $region24
        $region23: #{tpu_custom_call.1} parent=19 // pred_region
          %s225 = sand.u32 %s68, 1
          %s226 = scalar_lea.sflag [#allocation8], %s225
          %s227 = sand.u32 %s68, 1
          %s228 = smul.addr %s227, 256
          %s229 = scalar_lea.vmem [#allocation7], %s228
          %s231 = ssub.s32 4096, 4096
          %232 = vsyncadd %s226, %s231
          %s233 = smul.addr %s28, 32
          %s234 = smul.addr %s233, 128
          %s235 = scalar_lea.hbm %s1, %s234
          %s236 = sshll.u32 %s229, 4
          %s237 = int_to_ptr.vmem [resolvable:$true] %s236
          %242 = dma.hbm_to_vmem [thread:$0]  %s235, 4096, %s237, %s226, 256, 256, 16
        $region24: #{tpu_custom_call.1} parent=19 // pred_fallthru
          _
        // Predicated region
        $region25: #{tpu_custom_call.1} parent=19 // pred_check
          %p243 = pneg %p104
        $region26: #{tpu_custom_call.1} parent=19 // pred_check_branch
          %245 = sbr.rel (%p243) target = $region28
        $region27: #{tpu_custom_call.1} parent=19 // pred_region
          %p246 = scmp.lt.s32.totalorder %s28, 2
          %s247 = scalar_select %p246, %s28, 2
          %s248 = smul.addr %s247, 2
          %s249 = scalar_lea.vmem %s2, %s248
        $region28: #{tpu_custom_call.1} parent=19 // pred_fallthru
          _
        // Predicated region
        $region29: #{tpu_custom_call.1} parent=19 // pred_check
          %p250 = pneg %p130
        $region30: #{tpu_custom_call.1} parent=19 // pred_check_branch
          %252 = sbr.rel (%p250) target = $region32
        $region31: #{tpu_custom_call.1} parent=19 // pred_region
          %p253 = scmp.lt.s32.totalorder %s28, 2
          %s254 = scalar_select %p253, %s28, 2
          %s255 = scalar_lea.vmem %s3, %s254
        $region32: #{tpu_custom_call.1} parent=19 // pred_fallthru
          _
      $region20: #{tpu_custom_call.1} parent=5 // pred_fallthru
        _
      %p256 = scmp.le.s32.totalorder 1, %s20
      %p257 = scmp.lt.s32.totalorder %s20, 4
      %p258 = pnand %p256, %p257
      %p259 = pneg %p258
      // Predicated region
      $region33: #{tpu_custom_call.1} parent=5 // pred_check
        _
      $region34: #{tpu_custom_call.1} parent=5 // pred_check_branch
        %261 = sbr.rel (%p258) target = $region36
      $region35: #{tpu_custom_call.1} parent=5 // pred_region
        %s262 = ssub.s32 %s20, 1
        // Predicated region
        $region37: #{tpu_custom_call.1} parent=35 // pred_check
          %p263 = pneg %p58
        $region38: #{tpu_custom_call.1} parent=35 // pred_check_branch
          %265 = sbr.rel (%p263) target = $region40
        $region39: #{tpu_custom_call.1} parent=35 // pred_region
          %266 = dma.done [#allocation5], 128
        $region40: #{tpu_custom_call.1} parent=35 // pred_fallthru
          _
        %s267 = sand.u32 %s71, 1
        %s268 = scalar_lea.sflag [#allocation8], %s267
        %s269 = sand.u32 %s71, 1
        %s270 = smul.addr %s269, 256
        %s271 = scalar_lea.vmem [#allocation7], %s270
        // Predicated region
        $region41: #{tpu_custom_call.1} parent=35 // pred_check
          %p272 = pneg %p84
        $region42: #{tpu_custom_call.1} parent=35 // pred_check_branch
          %274 = sbr.rel (%p272) target = $region44
        $region43: #{tpu_custom_call.1} parent=35 // pred_region
          %275 = dma.done %s268, 4096
        $region44: #{tpu_custom_call.1} parent=35 // pred_fallthru
          _
        %p276 = pneg %p58
        %p277 = pneg %p55
        %s278 = sand.u32 %s71, 1
        %s279 = scalar_lea.sflag [#allocation8], %s278
        %s280 = sand.u32 %s71, 1
        %s281 = smul.addr %s280, 256
        %s282 = scalar_lea.vmem [#allocation7], %s281
        %p283 = pneg %p84
        %p284 = pneg %p81
        %p285 = scmp.lt.s32.totalorder %s30, 2
        %s286 = scalar_select %p285, %s30, 2
        %s287 = smul.addr %s286, 2
        %s288 = scalar_lea.vmem %s2, %s287
        %p289 = pneg %p110
        %p290 = pneg %p107
        %p291 = scmp.lt.s32.totalorder %s30, 2
        %s292 = scalar_select %p291, %s30, 2
        %s293 = scalar_lea.vmem %s3, %s292
        %p294 = pneg %p136
        %p295 = pneg %p133
        %p296 = pneg %p164
        %p297 = pneg %p161
        %s298 = sand.u32 %s151, 1
        %s299 = scalar_lea.sflag [#allocation6], %s298
        %s300 = sand.u32 %s151, 1
        %s301 = smul.addr %s300, 8
        %s302 = scalar_lea.vmem [#allocation9], %s301
        %p303 = pneg %p190
        %p304 = pneg %p187
        %p305 = scmp.lt.s32.totalorder %s30, 2
        %s306 = scalar_select %p305, %s30, 2
        %s307 = smul.addr %s306, 2
        %s308 = scalar_lea.vmem %s2, %s307
        %p309 = scmp.lt.s32.totalorder %s30, 2
        %s310 = scalar_select %p309, %s30, 2
        %s311 = scalar_lea.vmem %s3, %s310
        %p312 = scmp.eq.s32.totalorder %s30, 0
        // Predicated region
        $region45: #{tpu_custom_call.1} parent=35 // pred_check
          %p313 = pneg %p312
        $region46: #{tpu_custom_call.1} parent=35 // pred_check_branch
          %315 = sbr.rel (%p313) target = $region48
        $region47: #{tpu_custom_call.1} parent=35 // pred_region
          %v316 = vld [vmem:[#allocation4] sm:$0xff]
          %317 = vst [vmem:[#allocation2] sm:$0xff] %v316
          %vm318 = vcmask 57344
          %319 = vst.msk [vmem:[#allocation3] sm:$0x1] %vm318, 0.0
        $region48: #{tpu_custom_call.1} parent=35 // pred_fallthru
          _
        %v320 = vld [vmem:[#allocation2] sm:$0xff]
        %v321 = vld [vmem:[%s271] sm:$0xff]
        %v322 = vld [vmem:[%s271 + $0x8] sm:$0xff]
        %v323 = vld [vmem:[%s271 + $0x10] sm:$0xff]
        %v324 = vld [vmem:[%s271 + $0x18] sm:$0xff]
        %v325 = vld [vmem:[%s271 + $0x20] sm:$0xff]
        %v326 = vld [vmem:[%s271 + $0x28] sm:$0xff]
        %v327 = vld [vmem:[%s271 + $0x30] sm:$0xff]
        %v328 = vld [vmem:[%s271 + $0x38] sm:$0xff]
        %v329 = vld [vmem:[%s271 + $0x40] sm:$0xff]
        %v330 = vld [vmem:[%s271 + $0x48] sm:$0xff]
        %v331 = vld [vmem:[%s271 + $0x50] sm:$0xff]
        %v332 = vld [vmem:[%s271 + $0x58] sm:$0xff]
        %v333 = vld [vmem:[%s271 + $0x60] sm:$0xff]
        %v334 = vld [vmem:[%s271 + $0x68] sm:$0xff]
        %v335 = vld [vmem:[%s271 + $0x70] sm:$0xff]
        %v336 = vld [vmem:[%s271 + $0x78] sm:$0xff]
        %v337 = vld [vmem:[%s271 + $0x80] sm:$0xff]
        %v338 = vld [vmem:[%s271 + $0x88] sm:$0xff]
        %v339 = vld [vmem:[%s271 + $0x90] sm:$0xff]
        %v340 = vld [vmem:[%s271 + $0x98] sm:$0xff]
        %v341 = vld [vmem:[%s271 + $0xa0] sm:$0xff]
        %v342 = vld [vmem:[%s271 + $0xa8] sm:$0xff]
        %v343 = vld [vmem:[%s271 + $0xb0] sm:$0xff]
        %v344 = vld [vmem:[%s271 + $0xb8] sm:$0xff]
        %v345 = vld [vmem:[%s271 + $0xc0] sm:$0xff]
        %v346 = vld [vmem:[%s271 + $0xc8] sm:$0xff]
        %v347 = vld [vmem:[%s271 + $0xd0] sm:$0xff]
        %v348 = vld [vmem:[%s271 + $0xd8] sm:$0xff]
        %v349 = vld [vmem:[%s271 + $0xe0] sm:$0xff]
        %v350 = vld [vmem:[%s271 + $0xe8] sm:$0xff]
        %v351 = vld [vmem:[%s271 + $0xf0] sm:$0xff]
        %v352 = vld [vmem:[%s271 + $0xf8] sm:$0xff]
        %v353 = vld [vmem:[%s308] sm:$0x3]
        %v355 = vlaneseq
        %v356 = vshrl.u32 %v355, 7
        %v357 = vsub.s32 0, %v356
        %v358 = vrot.slane %v353, %v357
        %v359 = vlaneseq
        %v360 = vshrl.u32 %v359, 7
        %v361 = vsub.s32 1, %v360
        %v362 = vrot.slane %v353, %v361
        %365 = vmatprep.subr.mxu0 %v322
        %366 = vmatpush1.msra.mxu0 %v321
        %367 = vmatprep.subr.mxu0 %v324
        %368 = vmatpush1.msra.mxu0 %v323
        %369 = vmatprep.subr.mxu0 %v326
        %370 = vmatpush1.msra.mxu0 %v325
        %371 = vmatprep.subr.mxu0 %v328
        %372 = vmatpush1.msra.mxu0 %v327
        %373 = vmatprep.subr.mxu0 %v330
        %374 = vmatpush1.msra.mxu0 %v329
        %375 = vmatprep.subr.mxu0 %v332
        %376 = vmatpush1.msra.mxu0 %v331
        %377 = vmatprep.subr.mxu0 %v334
        %378 = vmatpush1.msra.mxu0 %v333
        %379 = vmatprep.subr.mxu0 %v336
        %380 = vmatpush1.msra.mxu0 %v335
        %381 = vmatprep.subr.mxu0 %v338
        %382 = vmatpush1.msra.mxu0 %v337
        %383 = vmatprep.subr.mxu0 %v340
        %384 = vmatpush1.msra.mxu0 %v339
        %385 = vmatprep.subr.mxu0 %v342
        %386 = vmatpush1.msra.mxu0 %v341
        %387 = vmatprep.subr.mxu0 %v344
        %388 = vmatpush1.msra.mxu0 %v343
        %389 = vmatprep.subr.mxu0 %v346
        %390 = vmatpush1.msra.mxu0 %v345
        %391 = vmatprep.subr.mxu0 %v348
        %392 = vmatpush1.msra.mxu0 %v347
        %393 = vmatprep.subr.mxu0 %v350
        %394 = vmatpush1.msra.mxu0 %v349
        %395 = vmatprep.subr.mxu0 %v352
        %396 = vmatpush1.msra.mxu0 %v351
        %397 = vmatprep.subr.mxu0 0.0
        %398 = vmatpush1.msra.mxu0 0.0
        %399 = vmatprep.subr.mxu0 0.0
        %400 = vmatpush1.msra.mxu0 0.0
        %401 = vmatprep.subr.mxu0 0.0
        %402 = vmatpush1.msra.mxu0 0.0
        %403 = vmatprep.subr.mxu0 0.0
        %404 = vmatpush1.msra.mxu0 0.0
        %405 = vmatprep.subr.mxu0 0.0
        %406 = vmatpush1.msra.mxu0 0.0
        %407 = vmatprep.subr.mxu0 0.0
        %408 = vmatpush1.msra.mxu0 0.0
        %409 = vmatprep.subr.mxu0 0.0
        %410 = vmatpush1.msra.mxu0 0.0
        %411 = vmatprep.subr.mxu0 0.0
        %412 = vmatpush1.msra.mxu0 0.0
        %413 = vmatprep.subr.mxu0 0.0
        %414 = vmatpush1.msra.mxu0 0.0
        %415 = vmatprep.subr.mxu0 0.0
        %416 = vmatpush1.msra.mxu0 0.0
        %417 = vmatprep.subr.mxu0 0.0
        %418 = vmatpush1.msra.mxu0 0.0
        %419 = vmatprep.subr.mxu0 0.0
        %420 = vmatpush1.msra.mxu0 0.0
        %421 = vmatprep.subr.mxu0 0.0
        %422 = vmatpush1.msra.mxu0 0.0
        %423 = vmatprep.subr.mxu0 0.0
        %424 = vmatpush1.msra.mxu0 0.0
        %425 = vmatprep.subr.mxu0 0.0
        %426 = vmatpush1.msra.mxu0 0.0
        %427 = vmatprep.subr.mxu0 0.0
        %428 = vmatpush1.msra.mxu0 0.0
        %429 = vmatprep.mubr.f32.mxu0 0.0
        %430 = vmatmul.mubr.f32.gmra.mrb[0].mxu0 %v320
        %v431 = vpop.f32.mrb[0].mxu0
        %v432 = vadd.f32 %v358, %v431
        %v433 = vpop.f32.mrb[0].mxu0
        %v434 = vadd.f32 %v362, %v433
        %435 = vdwg.mxu0
        %v436 = vld [vmem:[%s311] sm:$0x1]
        %v437 = vtanh.pop %v432
        %v439 = vlaneseq
        %v440 = vshrl.u32 %v439, 7
        %v441 = vsub.s32 0, %v440
        %v442 = vrot.slane %v436, %v441
        %v444 = vmul.f32 %v437, %v442
        %v445 = vmul.f32 %v434, %v442
        %v446 = vmul.f32 %v444, 1.442695
        %v447 = vpow.pop %v446
        %v448 = vmul.f32 %v320, %v447
        %v449 = vadd.f32 %v448, %v445
        %450 = vst [vmem:[#allocation2] sm:$0xff] %v449
        %451 = vst [vmem:[%s302] sm:$0xff] %v449
        %v452 = vld [vmem:[#allocation3] sm:$0x1]
        %453 = vmatprep.subr.mxu0 0.0
        %454 = vmatpush1.xpose.msra.mxu0 %v444
        %455 = vmatprep.subr.mxu0 0.0
        %456 = vmatpush1.xpose.msra.mxu0 0.0
        %457 = vmatprep.subr.mxu0 0.0
        %458 = vmatpush1.xpose.msra.mxu0 0.0
        %459 = vmatprep.subr.mxu0 0.0
        %460 = vmatpush1.xpose.msra.mxu0 0.0
        %461 = vmatprep.subr.mxu0 0.0
        %462 = vmatpush1.xpose.msra.mxu0 0.0
        %463 = vmatprep.subr.mxu0 0.0
        %464 = vmatpush1.xpose.msra.mxu0 0.0
        %465 = vmatprep.subr.mxu0 0.0
        %466 = vmatpush1.xpose.msra.mxu0 0.0
        %467 = vmatprep.subr.mxu0 0.0
        %468 = vmatpush1.xpose.msra.mxu0 0.0
        %469 = vmatprep.subr.mxu0 0.0
        %470 = vmatpush1.xpose.msra.mxu0 0.0
        %471 = vmatprep.subr.mxu0 0.0
        %472 = vmatpush1.xpose.msra.mxu0 0.0
        %473 = vmatprep.subr.mxu0 0.0
        %474 = vmatpush1.xpose.msra.mxu0 0.0
        %475 = vmatprep.subr.mxu0 0.0
        %476 = vmatpush1.xpose.msra.mxu0 0.0
        %477 = vmatprep.subr.mxu0 0.0
        %478 = vmatpush1.xpose.msra.mxu0 0.0
        %479 = vmatprep.subr.mxu0 0.0
        %480 = vmatpush1.xpose.msra.mxu0 0.0
        %481 = vmatprep.subr.mxu0 0.0
        %482 = vmatpush1.xpose.msra.mxu0 0.0
        %483 = vmatprep.subr.mxu0 0.0
        %484 = vmatpush1.xpose.msra.mxu0 0.0
        %485 = vmatprep.subr.mxu0 0.0
        %486 = vmatpush1.xpose.msra.mxu0 0.0
        %487 = vmatprep.subr.mxu0 0.0
        %488 = vmatpush1.xpose.msra.mxu0 0.0
        %489 = vmatprep.subr.mxu0 0.0
        %490 = vmatpush1.xpose.msra.mxu0 0.0
        %491 = vmatprep.subr.mxu0 0.0
        %492 = vmatpush1.xpose.msra.mxu0 0.0
        %493 = vmatprep.subr.mxu0 0.0
        %494 = vmatpush1.xpose.msra.mxu0 0.0
        %495 = vmatprep.subr.mxu0 0.0
        %496 = vmatpush1.xpose.msra.mxu0 0.0
        %497 = vmatprep.subr.mxu0 0.0
        %498 = vmatpush1.xpose.msra.mxu0 0.0
        %499 = vmatprep.subr.mxu0 0.0
        %500 = vmatpush1.xpose.msra.mxu0 0.0
        %501 = vmatprep.subr.mxu0 0.0
        %502 = vmatpush1.xpose.msra.mxu0 0.0
        %503 = vmatprep.subr.mxu0 0.0
        %504 = vmatpush1.xpose.msra.mxu0 0.0
        %505 = vmatprep.subr.mxu0 0.0
        %506 = vmatpush1.xpose.msra.mxu0 0.0
        %507 = vmatprep.subr.mxu0 0.0
        %508 = vmatpush1.xpose.msra.mxu0 0.0
        %509 = vmatprep.subr.mxu0 0.0
        %510 = vmatpush1.xpose.msra.mxu0 0.0
        %511 = vmatprep.subr.mxu0 0.0
        %512 = vmatpush1.xpose.msra.mxu0 0.0
        %513 = vmatprep.subr.mxu0 0.0
        %514 = vmatpush1.xpose.msra.mxu0 0.0
        %515 = vmatprep.subr.mxu0 0.0
        %516 = vmatpush1.xpose.msra.mxu0 0.0
        %517 = vmatprep.mubr.f32.mxu0 0.0
        %518 = vmatmul.mubr.f32.gmra.mrb[0].mxu0 1.0
        %v519 = vpop.f32.mrb[0].mxu0
        %v520 = vadd.f32 0.0, %v519
        %v521 = vpop.f32.mrb[0].mxu0
        %522 = vdwg.mxu0
        %v523 = vadd.f32 %v452, %v520
        %vm524 = vcmask 57344
        %525 = vst.msk [vmem:[#allocation3] sm:$0x1] %vm524, %v523
        %p526 = scmp.eq.s32.totalorder %s30, 2
        // Predicated region
        $region49: #{tpu_custom_call.1} parent=35 // pred_check
          %p527 = pneg %p526
        $region50: #{tpu_custom_call.1} parent=35 // pred_check_branch
          %529 = sbr.rel (%p527) target = $region52
        $region51: #{tpu_custom_call.1} parent=35 // pred_region
          %v530 = vld [vmem:[#allocation3] sm:$0x1]
          %531 = vst.msk [vmem:[#allocation10] sm:$0x1] %vm524, %v530
        $region52: #{tpu_custom_call.1} parent=35 // pred_fallthru
          _
        %s532 = sand.u32 %s151, 1
        %s533 = scalar_lea.sflag [#allocation6], %s532
        %s534 = sand.u32 %s151, 1
        %s535 = smul.addr %s534, 8
        %s536 = scalar_lea.vmem [#allocation9], %s535
        // Predicated region
        $region53: #{tpu_custom_call.1} parent=35 // pred_check
          %p537 = pneg %p161
        $region54: #{tpu_custom_call.1} parent=35 // pred_check_branch
          %539 = sbr.rel (%p537) target = $region56
        $region55: #{tpu_custom_call.1} parent=35 // pred_region
          %s541 = ssub.s32 128, 128
          %542 = vsyncadd %s533, %s541
          %s543 = sadd.s32 %s29, %s30
          %s544 = smul.addr %s543, 128
          %s545 = scalar_lea.hbm %s4, %s544
          %s547 = sshll.u32 %s536, 4
          %s548 = int_to_ptr.vmem [resolvable:$true] %s547
          %550 = dma.vmem_to_hbm [thread:$0]  %s548, 128, %s545, %s533
        $region56: #{tpu_custom_call.1} parent=35 // pred_fallthru
          _
        // Predicated region
        $region57: #{tpu_custom_call.1} parent=35 // pred_check
          %p551 = pneg %p187
        $region58: #{tpu_custom_call.1} parent=35 // pred_check_branch
          %553 = sbr.rel (%p551) target = $region60
        $region59: #{tpu_custom_call.1} parent=35 // pred_region
          %s555 = ssub.s32 16, 16
          %556 = vsyncadd [#allocation11], %s555
          %s557 = smul.addr %s29, 16
          %s558 = scalar_lea.hbm %s5, %s557
          %s560 = sshll.u32 [#allocation10], 4
          %s561 = int_to_ptr.vmem [resolvable:$true] %s560
          %563 = dma.vmem_to_hbm [thread:$0]  %s561, 16, %s558, [#allocation11]
        $region60: #{tpu_custom_call.1} parent=35 // pred_fallthru
          _
        // Predicated region
        $region61: #{tpu_custom_call.1} parent=35 // pred_check
          %p564 = pneg %p187
        $region62: #{tpu_custom_call.1} parent=35 // pred_check_branch
          %566 = sbr.rel (%p564) target = $region64
        $region63: #{tpu_custom_call.1} parent=35 // pred_region
          %567 = dma.done [#allocation11], 16
        $region64: #{tpu_custom_call.1} parent=35 // pred_fallthru
          _
      $region36: #{tpu_custom_call.1} parent=5 // pred_fallthru
        _
      %p568 = scmp.le.s32.totalorder 2, %s20
      // Predicated region
      $region65: #{tpu_custom_call.1} parent=5 // pred_check
        %p569 = pneg %p568
      $region66: #{tpu_custom_call.1} parent=5 // pred_check_branch
        %571 = sbr.rel (%p569) target = $region68
      $region67: #{tpu_custom_call.1} parent=5 // pred_region
        %s572 = ssub.s32 %s20, 2
        // Predicated region
        $region69: #{tpu_custom_call.1} parent=67 // pred_check
          %p573 = pneg %p167
        $region70: #{tpu_custom_call.1} parent=67 // pred_check_branch
          %575 = sbr.rel (%p573) target = $region72
        $region71: #{tpu_custom_call.1} parent=67 // pred_region
          %s576 = sand.u32 %s152, 1
          %s577 = scalar_lea.sflag [#allocation6], %s576
          %s578 = sand.u32 %s152, 1
          %s579 = smul.addr %s578, 8
          %s580 = scalar_lea.vmem [#allocation9], %s579
          %581 = dma.done %s577, 128
        $region72: #{tpu_custom_call.1} parent=67 // pred_fallthru
          _
      $region68: #{tpu_custom_call.1} parent=5 // pred_fallthru
        _
    $region6: #{tpu_custom_call.1} parent=1 // loop_footer
      %s24 = sadd.s32 1, %s20
    $region7: #{tpu_custom_call.1} parent=1 // loop_footer_branch
      %19 = sbr.rel target = $region3
    $region8: #{tpu_custom_call.1} parent=1 // loop_exit
      _
    %582 = vsyncpa [#allocation5], 1
    %s583 = scalar_lea.sflag [#allocation5], 1
    %584 = vsyncpa %s583, 1
    %585 = vsyncpa [#allocation8], 1
    %s586 = scalar_lea.sflag [#allocation8], 1
    %587 = vsyncpa %s586, 1
    %588 = vsyncpa [#allocation6], 1
    %s589 = scalar_lea.sflag [#allocation6], 1
    %590 = vsyncpa %s589, 1
    %591 = vsyncpa [#allocation11], 1

</llo_original>
